<compile_context>
chip_gen: v6e
topology: v6e:2x2x1
jax: 0.10.0
libtpu: 0.0.40
codegen_flags: <defaults>
</compile_context>

<pallas_src>
import functools

import jax
import jax.numpy as jnp
from jax.experimental import pallas as pl
from jax.experimental.pallas import tpu as pltpu


def _mdn_fused_kernel(x_ref, w_ref, b_ref, out_ref, *, num_gaussians):
    """Fused Linear (D -> Npad) + masked softmax over the first G columns.

    Output layout along the last axis: [pi (G) | mu (G*O) | sigma (G*O*O) | pad].
    """
    x = x_ref[...]
    # Single MXU matmul covering all three heads.
    y = jnp.dot(x, w_ref[...], preferred_element_type=jnp.float32) + b_ref[...]

    # Softmax over the pi columns only, computed on full-width vregs via a
    # column mask (non-pi columns contribute exp(-inf) == 0 to the sum, so the
    # denominator is exact; denom >= 1 because the row max gives exp(0) = 1).
    col = jax.lax.broadcasted_iota(jnp.int32, y.shape, 1)
    is_pi = col < num_gaussians
    logits = jnp.where(is_pi, y, -jnp.inf)
    m = jnp.max(logits, axis=-1, keepdims=True)
    e = jnp.exp(logits - m)
    denom = jnp.sum(e, axis=-1, keepdims=True)
    pi = e * pl.reciprocal(denom, approx=True)      # EUP reciprocal (free slot)

    # One lane-dense store: softmaxed pi columns, raw linear outputs elsewhere.
    out_ref[...] = jnp.where(is_pi, pi, y)


def _pick_batch_tile(B, max_tb=512):
    """Largest tile <= max_tb that divides B and is a multiple of 8, else B."""
    tb = max_tb
    while tb >= 8:
        if B % tb == 0:
            return tb
        tb //= 2
    return B  # full extent; always legal for the second-to-last block dim


def mdn_forward(x, params, *, num_gaussians, out_features):
    """x: (B, D) float32. Returns (pi (B,G), sigma (B,G,O,O), mu (B,G,O))."""
    B, D = x.shape
    G, O = num_gaussians, out_features
    w_pi, b_pi, w_sig, b_sig, w_mu, b_mu = params

    # Fuse weights/biases along the output axis: [pi | mu | sigma], then pad
    # the fused width up to a multiple of 128 for lane-dense stores.
    n_total = G + G * O + G * O * O
    n_pad = ((n_total + 127) // 128) * 128
    w_fused = jnp.concatenate([w_pi, w_mu, w_sig], axis=1)          # (D, n_total)
    b_fused = jnp.concatenate([b_pi, b_mu, b_sig], axis=1)          # (1, n_total)
    if n_pad != n_total:
        w_fused = jnp.pad(w_fused, ((0, 0), (0, n_pad - n_total)))
        b_fused = jnp.pad(b_fused, ((0, 0), (0, n_pad - n_total)))

    tb = _pick_batch_tile(B)
    grid = (pl.cdiv(B, tb),)

    kernel = functools.partial(_mdn_fused_kernel, num_gaussians=G)

    out = pl.pallas_call(
        kernel,
        out_shape=jax.ShapeDtypeStruct((B, n_pad), jnp.float32),
        grid=grid,
        in_specs=[
            pl.BlockSpec((tb, D), lambda i: (i, 0)),        # x: tiled over batch
            pl.BlockSpec((D, n_pad), lambda i: (0, 0)),     # fused W: resident
            pl.BlockSpec((1, n_pad), lambda i: (0, 0)),     # fused b: resident
        ],
        out_specs=pl.BlockSpec((tb, n_pad), lambda i: (i, 0)),
        compiler_params=pltpu.CompilerParams(
            dimension_semantics=("parallel",)),             # batch across TCs (v7x)
    )(x, w_fused, b_fused)

    # Slice / reshape the fused output back to the PyTorch-module layout.
    pi = out[:, :G]
    mu = out[:, G:G + G * O].reshape(B, G, O)
    sigma = out[:, G + G * O:G + G * O + G * O * O].reshape(B, G, O, O)
    return pi, sigma, mu


def init_mdn_params(key, in_features, out_features, num_gaussians):
    """Deterministic synthetic init matching nn.Linear shapes.

    PyTorch nn.Linear uses U(-1/sqrt(in), 1/sqrt(in)); mimic that here.
    Weights stored transposed as (in_features, out_dim)."""
    D, O, G = in_features, out_features, num_gaussians
    bound = 1.0 / (D ** 0.5)
    ks = jax.random.split(key, 6)

    def u(k, shape):
        return jax.random.uniform(k, shape, jnp.float32, minval=-bound, maxval=bound)

    w_pi = u(ks[0], (D, G))
    b_pi = u(ks[1], (1, G))
    w_sig = u(ks[2], (D, G * O * O))
    b_sig = u(ks[3], (1, G * O * O))
    w_mu = u(ks[4], (D, G * O))
    b_mu = u(ks[5], (1, G * O))
    return (w_pi, b_pi, w_sig, b_sig, w_mu, b_mu)


def mdn_reference(x, params, *, num_gaussians, out_features):
    """Pure-JAX reference for correctness checking."""
    B = x.shape[0]
    G, O = num_gaussians, out_features
    w_pi, b_pi, w_sig, b_sig, w_mu, b_mu = params
    pi = jax.nn.softmax(x @ w_pi + b_pi, axis=1)
    sigma = (x @ w_sig + b_sig).reshape(B, G, O, O)
    mu = (x @ w_mu + b_mu).reshape(B, G, O)
    return pi, sigma, mu


if __name__ == "__main__":
    # Small shapes consistent with the module: B x D minibatch -> (pi, sigma, mu).
    B, D, O, G = 2, 32, 4, 8

    key = jax.random.PRNGKey(0)
    k_x, k_p = jax.random.split(key)
    x = jax.random.normal(k_x, (B, D), jnp.float32)
    params = init_mdn_params(k_p, D, O, G)

    pi, sigma, mu = mdn_forward(x, params, num_gaussians=G, out_features=O)
    jax.block_until_ready((pi, sigma, mu))

    # Sanity check against pure-JAX reference.
    pi_r, sigma_r, mu_r = mdn_reference(x, params, num_gaussians=G, out_features=O)
    assert pi.shape == (B, G) and sigma.shape == (B, G, O, O) and mu.shape == (B, G, O)
    # pi uses the EUP approx reciprocal -> slightly looser tolerance.
    assert jnp.allclose(pi, pi_r, atol=2e-3, rtol=2e-3)
    assert jnp.allclose(sigma, sigma_r, atol=1e-5)
    assert jnp.allclose(mu, mu_r, atol=1e-5)

    print("KERNEL_OK")
</pallas_src>

<mosaic_0001>
module attributes {stable_mosaic.version = 11 : i64} {
  func.func @_mdn_fused_kernel(%arg0: i32, %arg1: memref<2x32xf32, #tpu.memory_space<vmem>>, %arg2: memref<32x256xf32, #tpu.memory_space<vmem>>, %arg3: memref<1x256xf32, #tpu.memory_space<vmem>>, %arg4: memref<2x256xf32, #tpu.memory_space<vmem>>) attributes {dimension_semantics = [#tpu.dimension_semantics<parallel>], iteration_bounds = array<i64: 1>, scalar_prefetch = 0 : i64, scratch_operands = 0 : i64, tpu.core_type = #tpu.core_type<tc>, window_params = [{transform_indices = @transform_0, window_bounds = array<i64: 2, 32>}, {pipeline_mode = #tpu.pipeline_mode<synchronous>, transform_indices = @transform_1, window_bounds = array<i64: 32, 256>}, {pipeline_mode = #tpu.pipeline_mode<synchronous>, transform_indices = @transform_2, window_bounds = array<i64: 1, 256>}, {transform_indices = @transform_3, window_bounds = array<i64: 2, 256>}]} {
    %c0 = arith.constant 0 : index
    %c0_0 = arith.constant 0 : index
    %0 = vector.load %arg1[%c0, %c0_0] : memref<2x32xf32, #tpu.memory_space<vmem>>, vector<2x32xf32>
    %c0_1 = arith.constant 0 : index
    %c0_2 = arith.constant 0 : index
    %1 = vector.load %arg2[%c0_1, %c0_2] : memref<32x256xf32, #tpu.memory_space<vmem>>, vector<32x256xf32>
    %cst = arith.constant dense<0.000000e+00> : vector<2x256xf32>
    %2 = tpu.matmul %0, %1, %cst {dimension_numbers = #tpu.dot_dimension_numbers<[1], [0], [0], [1], [0, 0, 1, 1], [], []>} : vector<2x32xf32>, vector<32x256xf32>, vector<2x256xf32> -> vector<2x256xf32>
    %c0_3 = arith.constant 0 : index
    %c0_4 = arith.constant 0 : index
    %3 = vector.load %arg3[%c0_3, %c0_4] : memref<1x256xf32, #tpu.memory_space<vmem>>, vector<1x256xf32>
    %4 = vector.broadcast %3 : vector<1x256xf32> to vector<2x256xf32>
    %5 = arith.addf %2, %4 : vector<2x256xf32>
    %6 = tpu.iota {dimensions = array<i32: 1>} : vector<2x256xi32>
    %c8_i32 = arith.constant 8 : i32
    %7 = vector.broadcast %c8_i32 : i32 to vector<2x256xi32>
    %8 = arith.cmpi slt, %6, %7 : vector<2x256xi32>
    %cst_5 = arith.constant 0xFF800000 : f32
    %9 = vector.broadcast %cst_5 : f32 to vector<2x256xf32>
    %10 = arith.select %8, %5, %9 : vector<2x256xi1>, vector<2x256xf32>
    %cst_6 = arith.constant dense<0xFF800000> : vector<2xf32>
    %11 = vector.multi_reduction <maximumf>, %10, %cst_6 [1] : vector<2x256xf32> to vector<2xf32>
    %12 = vector.shape_cast %11 : vector<2xf32> to vector<2x1xf32>
    %13 = vector.broadcast %12 : vector<2x1xf32> to vector<2x256xf32>
    %14 = arith.subf %10, %13 : vector<2x256xf32>
    %15 = math.exp %14 : vector<2x256xf32>
    %cst_7 = arith.constant dense<0.000000e+00> : vector<2xf32>
    %16 = vector.multi_reduction <add>, %15, %cst_7 [1] : vector<2x256xf32> to vector<2xf32>
    %17 = vector.shape_cast %16 : vector<2xf32> to vector<2x1xf32>
    %18 = tpu.reciprocal %17 {approx = true} : vector<2x1xf32> -> vector<2x1xf32>
    %19 = vector.broadcast %18 : vector<2x1xf32> to vector<2x256xf32>
    %20 = arith.mulf %15, %19 : vector<2x256xf32>
    %21 = arith.select %8, %20, %5 : vector<2x256xi1>, vector<2x256xf32>
    %c0_8 = arith.constant 0 : index
    %c0_9 = arith.constant 0 : index
    %22 = vector.load %arg4[%c0_8, %c0_9] : memref<2x256xf32, #tpu.memory_space<vmem>>, vector<2x256xf32>
    tpu.vector_store %arg4[%c0_8, %c0_9], %21 {strides = array<i32>} : memref<2x256xf32, #tpu.memory_space<vmem>>, vector<2x256xf32>,
    return
  }
  func.func @transform_0(%arg0: i32) -> (i32, i32) {
    %c0_i32 = arith.constant 0 : i32
    %c0_i32_0 = arith.constant 0 : i32
    return %arg0, %c0_i32 : i32, i32
  }
  func.func @transform_1(%arg0: i32) -> (i32, i32) {
    %c0_i32 = arith.constant 0 : i32
    %c0_i32_0 = arith.constant 0 : i32
    %c0_i32_1 = arith.constant 0 : i32
    return %c0_i32, %c0_i32_0 : i32, i32
  }
  func.func @transform_2(%arg0: i32) -> (i32, i32) {
    %c0_i32 = arith.constant 0 : i32
    %c0_i32_0 = arith.constant 0 : i32
    %c0_i32_1 = arith.constant 0 : i32
    return %c0_i32, %c0_i32_0 : i32, i32
  }
  func.func @transform_3(%arg0: i32) -> (i32, i32) {
    %c0_i32 = arith.constant 0 : i32
    %c0_i32_0 = arith.constant 0 : i32
    return %arg0, %c0_i32 : i32, i32
  }
}

</mosaic_0001>

<llo_original>
// kernel: tpu_custom_call.1
$region0: #{tpu_custom_call.1}
  #allocation0 [shape = 'u32[]', space=smem, size = 0x4, offset = 0x4, fixed_abs, tag = 'smem constant byte address 0x4 - core index']
  #allocation1 [shape = 'u32[144,128]{1,0:T(1,128)}', space=vmem, size = 0x12000, scoped, tag = 'internal scratch']
  %s0 = inlined_call_operand.hbm [shape: f32[2,32], index: 0, kind: input, shape index: {}]
  %s1 = inlined_call_operand.hbm [shape: f32[32,256], index: 1, kind: input, shape index: {}]
  %s2 = inlined_call_operand.vmem [shape: f32[1,256], index: 2, kind: input, shape index: {}]
  %s3 = inlined_call_operand.hbm [shape: f32[2,256], index: 3, kind: output, shape index: {}]
  %s4 = sld [smem:[#allocation0]]
  $region30: #{tpu_custom_call.1} parent=0
    _
  %s6 = ssub.s32 1, %s4
  %s7 = scalar_select 0, %s6, %s4
  $region1: #{tpu_custom_call.1} parent=0
    #allocation2 [shape = 'u8[1024]{0}', space=vmem, size = 0x400, scoped, tag = 'input window, operand 0, single buffered']
    #allocation3 [shape = 's32[1]{0}', space=sflag, size = 0x4, scoped, tag = 'scoped memory for tpu_custom_call.1']
    #allocation4 [shape = 's32[1]{0}', space=sflag, size = 0x4, scoped, tag = 'scoped memory for tpu_custom_call.1']
    #allocation5 [shape = 'u8[32768]{0}', space=vmem, size = 0x8000, scoped, tag = 'input window, operand 1, single buffered']
    #allocation6 [shape = 's32[1]{0}', space=sflag, size = 0x4, scoped, tag = 'scoped memory for tpu_custom_call.1']
    #allocation7 [shape = 'u8[2048]{0}', space=vmem, size = 0x800, scoped, tag = 'output window, operand 0, single buffered']
    %8 = vsyncpa [#allocation3], 0
    %9 = vsyncpa [#allocation6], 0
    %10 = vsyncpa [#allocation4], 0
    // Predicated region
    $region2: #{tpu_custom_call.1} parent=1 // pred_check
      _
    $region3: #{tpu_custom_call.1} parent=1 // pred_check_branch
      %12 = sbr.rel (0) target = $region5
    $region4: #{tpu_custom_call.1} parent=1 // pred_region
      %s14 = ssub.s32 32, 32
      %15 = vsyncadd [#allocation3], %s14
      %s17 = sshll.u32 [#allocation2], 4
      %s18 = int_to_ptr.vmem [resolvable:$true] %s17
      %20 = dma.hbm_to_vmem [thread:$0]  %s0, 32, %s18, [#allocation3]
    $region5: #{tpu_custom_call.1} parent=1 // pred_fallthru
      _
    // Predicated region
    $region6: #{tpu_custom_call.1} parent=1 // pred_check
      _
    $region7: #{tpu_custom_call.1} parent=1 // pred_check_branch
      %22 = sbr.rel (0) target = $region9
    $region8: #{tpu_custom_call.1} parent=1 // pred_region
      %s24 = ssub.s32 1024, 1024
      %25 = vsyncadd [#allocation6], %s24
      %s26 = sshll.u32 [#allocation5], 4
      %s27 = int_to_ptr.vmem [resolvable:$true] %s26
      %32 = dma.hbm_to_vmem [thread:$0]  %s1, 1024, %s27, [#allocation6], 256, 256, 16
    $region9: #{tpu_custom_call.1} parent=1 // pred_fallthru
      _
    // Predicated region
    $region10: #{tpu_custom_call.1} parent=1 // pred_check
      _
    $region11: #{tpu_custom_call.1} parent=1 // pred_check_branch
      %34 = sbr.rel (0) target = $region13
    $region12: #{tpu_custom_call.1} parent=1 // pred_region
      _
    $region13: #{tpu_custom_call.1} parent=1 // pred_fallthru
      _
    // Predicated region
    $region14: #{tpu_custom_call.1} parent=1 // pred_check
      _
    $region15: #{tpu_custom_call.1} parent=1 // pred_check_branch
      %36 = sbr.rel (0) target = $region17
    $region16: #{tpu_custom_call.1} parent=1 // pred_region
      %37 = dma.done [#allocation3], 32
    $region17: #{tpu_custom_call.1} parent=1 // pred_fallthru
      _
    // Predicated region
    $region18: #{tpu_custom_call.1} parent=1 // pred_check
      _
    $region19: #{tpu_custom_call.1} parent=1 // pred_check_branch
      %39 = sbr.rel (0) target = $region21
    $region20: #{tpu_custom_call.1} parent=1 // pred_region
      %40 = dma.done [#allocation6], 1024
    $region21: #{tpu_custom_call.1} parent=1 // pred_fallthru
      _
    %v41 = vld [vmem:[#allocation2] sm:$0x3]
    %v42 = vld [vmem:[#allocation5] sm:$0xff]
    %v43 = vld [vmem:[#allocation5 + $0x8] sm:$0xff]
    %v44 = vld [vmem:[#allocation5 + $0x10] sm:$0xff]
    %v45 = vld [vmem:[#allocation5 + $0x18] sm:$0xff]
    %v46 = vld [vmem:[#allocation5 + $0x20] sm:$0xff]
    %v47 = vld [vmem:[#allocation5 + $0x28] sm:$0xff]
    %v48 = vld [vmem:[#allocation5 + $0x30] sm:$0xff]
    %v49 = vld [vmem:[#allocation5 + $0x38] sm:$0xff]
    %v50 = vld [vmem:[%s2] sm:$0x3]
    %v52 = vlaneseq
    %v53 = vshrl.u32 %v52, 7
    %v54 = vsub.s32 0, %v53
    %v55 = vrot.slane %v50, %v54
    %v56 = vlaneseq
    %v57 = vshrl.u32 %v56, 7
    %v58 = vsub.s32 1, %v57
    %v59 = vrot.slane %v50, %v58
    %vm62 = vcmask 261120
    %v64 = vsel %vm62, %v41, 0
    %66 = vmatprep.subr.mxu0 0.0
    %67 = vmatpush1.msra.mxu0 0.0
    %68 = vmatprep.subr.mxu0 0.0
    %69 = vmatpush1.msra.mxu0 0.0
    %70 = vmatprep.subr.mxu0 0.0
    %71 = vmatpush1.msra.mxu0 0.0
    %72 = vmatprep.subr.mxu0 0.0
    %73 = vmatpush1.msra.mxu0 0.0
    %74 = vmatprep.subr.mxu0 0.0
    %75 = vmatpush1.msra.mxu0 0.0
    %76 = vmatprep.subr.mxu0 0.0
    %77 = vmatpush1.msra.mxu0 0.0
    %78 = vmatprep.subr.mxu0 0.0
    %79 = vmatpush1.msra.mxu0 0.0
    %80 = vmatprep.subr.mxu0 0.0
    %81 = vmatpush1.msra.mxu0 0.0
    %82 = vmatprep.subr.mxu0 0.0
    %83 = vmatpush1.msra.mxu0 0.0
    %84 = vmatprep.subr.mxu0 0.0
    %85 = vmatpush1.msra.mxu0 0.0
    %86 = vmatprep.subr.mxu0 0.0
    %87 = vmatpush1.msra.mxu0 0.0
    %88 = vmatprep.subr.mxu0 0.0
    %89 = vmatpush1.msra.mxu0 0.0
    %90 = vmatprep.subr.mxu0 %v49
    %91 = vmatpush1.msra.mxu0 %v48
    %92 = vmatprep.subr.mxu0 %v47
    %93 = vmatpush1.msra.mxu0 %v46
    %94 = vmatprep.subr.mxu0 %v45
    %95 = vmatpush1.msra.mxu0 %v44
    %96 = vmatprep.subr.mxu0 %v43
    %97 = vmatpush1.msra.mxu0 %v42
    %98 = vmatprep.subr.mxu0 0.0
    %99 = vmatpush2.msra.mxu0 0.0
    %100 = vmatprep.subr.mxu0 0.0
    %101 = vmatpush2.msra.mxu0 0.0
    %102 = vmatprep.subr.mxu0 0.0
    %103 = vmatpush2.msra.mxu0 0.0
    %104 = vmatprep.subr.mxu0 0.0
    %105 = vmatpush2.msra.mxu0 0.0
    %106 = vmatprep.subr.mxu0 0.0
    %107 = vmatpush2.msra.mxu0 0.0
    %108 = vmatprep.subr.mxu0 0.0
    %109 = vmatpush2.msra.mxu0 0.0
    %110 = vmatprep.subr.mxu0 0.0
    %111 = vmatpush2.msra.mxu0 0.0
    %112 = vmatprep.subr.mxu0 0.0
    %113 = vmatpush2.msra.mxu0 0.0
    %114 = vmatprep.subr.mxu0 0.0
    %115 = vmatpush2.msra.mxu0 0.0
    %116 = vmatprep.subr.mxu0 0.0
    %117 = vmatpush2.msra.mxu0 0.0
    %118 = vmatprep.subr.mxu0 0.0
    %119 = vmatpush2.msra.mxu0 0.0
    %120 = vmatprep.subr.mxu0 0.0
    %121 = vmatpush2.msra.mxu0 0.0
    %122 = vmatprep.subr.mxu0 0.0
    %123 = vmatpush2.msra.mxu0 0.0
    %124 = vmatprep.subr.mxu0 0.0
    %125 = vmatpush2.msra.mxu0 0.0
    %126 = vmatprep.subr.mxu0 0.0
    %127 = vmatpush2.msra.mxu0 0.0
    %128 = vmatprep.subr.mxu0 0.0
    %129 = vmatpush2.msra.mxu0 0.0
    %130 = vmatprep.mubr.f32.mxu0 0.0
    %131 = vmatmul.mubr.f32.gmra.mxu0 %v64
    %v132 = vpop.f32.mrf.mxu0
    %v133 = vadd.f32 %v55, %v132
    %v134 = vpop.f32.mrf.mxu0
    %v135 = vadd.f32 %v59, %v134
    %136 = vdwg.mxu0
    %v137 = vlaneseq
    %v138 = vand.u32 %v137, 127
    %v139 = vadd.s32 %v138, 128
    %vm140 = vcmp.lt.s32.totalorder %v138, 8
    %vm141 = vcmp.lt.s32.totalorder %v139, 8
    %v142 = vsel %vm140, %v133, -inf
    %v143 = vsel %vm141, %v135, -inf
    %vm144 = vcmask 1041408
    %v145 = vsel %vm144, %v142, -inf
    %v146 = vsel %vm144, %v143, -inf
    %v147 = vmax.f32 %v145, %v146
    %148 = vmax.xlane.f32.xlu0 %v147
    %v149 = vpop.xlane.xlu0 %148
    %v150 = vsub.f32 %v142, %v149
    %v151 = vsub.f32 %v143, %v149
    %v152 = vmul.f32 %v150, 1.442695
    %v153 = vpow.pop %v152
    %v154 = vmul.f32 %v151, 1.442695
    %v155 = vpow.pop %v154
    %v156 = vsel %vm144, %v153, 0.0
    %v157 = vsel %vm144, %v155, 0.0
    %v158 = vadd.f32 %v156, %v157
    %159 = vadd.xlane.f32.xlu0 %v158
    %v160 = vpop.xlane.xlu0 %159
    %v161 = vrcp.pop %v160
    %v162 = vmul.f32 %v153, %v161
    %v163 = vmul.f32 %v155, %v161
    %v164 = vsel %vm140, %v162, %v133
    %v165 = vsel %vm141, %v163, %v135
    %v168 = vcombine.low %v164, %v165
    %v170 = vunpack.c.l.s4 1983009808
    %v171 = vunpack.c.0.s8 %v170
    %v172 = vlaneseq
    %v173 = vshrl.u32 %v172, 7
    %v174 = vsub.s32 %v171, %v173
    %v175 = vrot.slane %v168, %v174
    %177 = vst [vmem:[#allocation7] sm:$0xf] %v175
    // Predicated region
    $region22: #{tpu_custom_call.1} parent=1 // pred_check
      _
    $region23: #{tpu_custom_call.1} parent=1 // pred_check_branch
      %179 = sbr.rel (0) target = $region25
    $region24: #{tpu_custom_call.1} parent=1 // pred_region
      %s181 = ssub.s32 64, 64
      %182 = vsyncadd [#allocation4], %s181
      %s184 = sshll.u32 [#allocation7], 4
      %s185 = int_to_ptr.vmem [resolvable:$true] %s184
      %187 = dma.vmem_to_hbm [thread:$0]  %s185, 64, %s3, [#allocation4]
    $region25: #{tpu_custom_call.1} parent=1 // pred_fallthru
      _
    // Predicated region
    $region26: #{tpu_custom_call.1} parent=1 // pred_check
      _
    $region27: #{tpu_custom_call.1} parent=1 // pred_check_branch
      %189 = sbr.rel (0) target = $region29
    $region28: #{tpu_custom_call.1} parent=1 // pred_region
      %190 = dma.done [#allocation4], 64
    $region29: #{tpu_custom_call.1} parent=1 // pred_fallthru
      _
    %191 = vsyncpa [#allocation3], 1
    %192 = vsyncpa [#allocation6], 1
    %193 = vsyncpa [#allocation4], 1

</llo_original>
